<compile_context>
chip_gen: v6e
topology: v6e:2x2x1
jax: 0.10.0
libtpu: 0.0.40
codegen_flags: <defaults>
</compile_context>

<pallas_src>
import jax
import jax.numpy as jnp
from jax.experimental import pallas as pl
from jax.experimental.pallas import tpu as pltpu


def _pooler_kernel(x_ref, w_ref, b_ref, o_ref):
    # x_ref: (tb, H_in)   first-token activations
    # w_ref: (H_in, tn)   K-major weight slab in compute dtype
    # b_ref: (1, tn)      bias slab, f32
    # o_ref: (tb, tn)
    x = x_ref[...].astype(w_ref.dtype)
    y = jnp.dot(x, w_ref[...], preferred_element_type=jnp.float32)  # MXU, f32 acc
    o_ref[...] = jnp.tanh(y + b_ref[...]).astype(o_ref.dtype)       # f32 bias+tanh


def _round_up(x, m):
    return ((x + m - 1) // m) * m


def _spec(block_shape, index_map, single_buffer):
    if single_buffer:
        return pl.BlockSpec(block_shape, index_map, pipeline_mode=pl.Buffered(1))
    return pl.BlockSpec(block_shape, index_map)


def prepare_pooler_params(weight, bias, compute_dtype=jnp.bfloat16):
    """One-time prep at parameter-load time (NOT per forward).

    weight: (H_out, H_in) PyTorch nn.Linear layout; bias: (H_out,).
    Returns (w_t, bias2d): K-major (H_in, H_out) weight in compute_dtype and
    (1, H_out) f32 bias.  Use compute_dtype=jnp.float32 for exact parity.
    """
    w_t = jnp.asarray(weight).T.astype(compute_dtype)
    bias2d = jnp.asarray(bias).reshape(1, -1).astype(jnp.float32)
    return w_t, bias2d


def sparse_bert_pooler_prepared(hidden_states, w_t, bias2d, *,
                                batch_tile=None, n_tile=None):
    """hidden_states: (B, S, H_in); w_t: (H_in, H_out) pre-transposed;
    bias2d: (1, H_out) f32  ->  (B, H_out) in hidden_states.dtype."""
    B, S, H_in = hidden_states.shape
    H_in_w, H_out = w_t.shape
    assert H_in_w == H_in and bias2d.shape == (1, H_out)

    x_itemsize = hidden_states.dtype.itemsize

    # --- batch tiling --------------------------------------------------------
    if batch_tile is None:
        if B <= 8:
            tb = B                                      # single step, full batch
        else:
            # >=2 grid steps: shards across v7x's two TCs and overlaps x-DMA
            # with compute; 8-aligned so stores stay unmasked; 512 cap keeps
            # the x tile small while amortizing per-step overhead.
            tb = min(512, _round_up(pl.cdiv(B, 2), 8))
    else:
        tb = batch_tile
    nb = pl.cdiv(B, tb)

    # --- H_out tiling --------------------------------------------------------
    if n_tile is None:
        tn = H_out
        if nb == 1 and H_out >= 256 and H_out % 128 == 0:
            # Single batch tile: split columns into 2-4 lane-aligned slabs so
            # the next weight slab prefetches under the current matmul/tanh.
            for parts in (2, 3, 4):
                if H_out % parts == 0 and (H_out // parts) % 128 == 0:
                    tn = H_out // parts
                    break
    else:
        tn = n_tile
    nn = pl.cdiv(H_out, tn)

    grid = (nb, nn)

    # --- x spec: fuse the seq==0 slice only when rows are DMA-efficient ------
    fuse_slice = H_in * x_itemsize >= 512
    if fuse_slice:
        x_in = hidden_states
        x_spec = _spec((tb, pl.Squeezed(), H_in), lambda i, j: (i, 0, 0),
                       single_buffer=(nb == 1))
    else:
        # Tiny rows: one contiguous (B, H_in) slab beats B short strided DMAs.
        x_in = hidden_states[:, 0]
        x_spec = _spec((tb, H_in), lambda i, j: (i, 0),
                       single_buffer=(nb == 1))

    # Weight/bias are grid-invariant when nn == 1 -> no double buffer needed.
    w_spec = _spec((H_in, tn), lambda i, j: (0, j), single_buffer=(nn == 1))
    b_spec = _spec((1, tn), lambda i, j: (0, j), single_buffer=(nn == 1))
    o_spec = pl.BlockSpec((tb, tn), lambda i, j: (i, j))

    cost = pl.CostEstimate(
        flops=2 * B * H_in * H_out,
        transcendentals=B * H_out,
        bytes_accessed=(B * H_in * x_itemsize                 # first-token rows
                        + H_in * H_out * w_t.dtype.itemsize   # weight, once
                        + H_out * 4                           # bias
                        + B * H_out * x_itemsize),            # output
    )

    return pl.pallas_call(
        _pooler_kernel,
        out_shape=jax.ShapeDtypeStruct((B, H_out), hidden_states.dtype),
        grid_spec=pltpu.PrefetchScalarGridSpec(
            num_scalar_prefetch=0,
            grid=grid,
            in_specs=[x_spec, w_spec, b_spec],
            out_specs=o_spec,
        ),
        compiler_params=pltpu.CompilerParams(
            dimension_semantics=("parallel", "parallel")),
        cost_estimate=cost,
    )(x_in, w_t, bias2d)


def sparse_bert_pooler(hidden_states, weight, bias, *,
                       compute_dtype=jnp.bfloat16, batch_tile=None, n_tile=None):
    """Convenience wrapper (preps weight inline).  On hot paths, call
    `prepare_pooler_params` once and use `sparse_bert_pooler_prepared`."""
    w_t, bias2d = prepare_pooler_params(weight, bias, compute_dtype)
    return sparse_bert_pooler_prepared(hidden_states, w_t, bias2d,
                                       batch_tile=batch_tile, n_tile=n_tile)


if __name__ == "__main__":
    # Module-consistent small shapes: batch=2, seq=8, hidden=32.
    B, S, H = 2, 8, 32
    key = jax.random.PRNGKey(0)
    k_x, k_w, k_b = jax.random.split(key, 3)

    hidden_states = jax.random.normal(k_x, (B, S, H), dtype=jnp.float32)
    bound = 1.0 / (H ** 0.5)
    weight = jax.random.uniform(k_w, (H, H), minval=-bound, maxval=bound,
                                dtype=jnp.float32)
    bias = jax.random.uniform(k_b, (H,), minval=-bound, maxval=bound,
                              dtype=jnp.float32)

    # Hoisted one-time weight prep (bf16 compute path).
    w_bf16, b2 = prepare_pooler_params(weight, bias, jnp.bfloat16)
    pooled = jax.block_until_ready(
        sparse_bert_pooler_prepared(hidden_states, w_bf16, b2))
    assert pooled.shape == (B, H)

    first = hidden_states[:, 0]
    ref_bf16 = jnp.tanh(
        jnp.dot(first.astype(jnp.bfloat16), weight.T.astype(jnp.bfloat16),
                preferred_element_type=jnp.float32) + bias)
    assert jnp.allclose(pooled, ref_bf16, atol=1e-4, rtol=1e-4)
    ref_f32 = jnp.tanh(first @ weight.T + bias)
    assert jnp.allclose(pooled, ref_f32, atol=2.5e-2, rtol=2.5e-2)

    # f32 compute path -> exact module parity (tight tolerance).
    w_f32, b2_f32 = prepare_pooler_params(weight, bias, jnp.float32)
    pooled_f32 = jax.block_until_ready(
        sparse_bert_pooler_prepared(hidden_states, w_f32, b2_f32))
    assert jnp.allclose(pooled_f32, ref_f32, atol=1e-5, rtol=1e-5)

    # Batch-tiled multi-step "parallel" grid path (B=16, tile=8).
    B2 = 16
    hs2 = jax.random.normal(jax.random.PRNGKey(1), (B2, S, H), dtype=jnp.float32)
    pooled2 = jax.block_until_ready(
        sparse_bert_pooler(hs2, weight, bias, batch_tile=8))
    ref2 = jnp.tanh(hs2[:, 0] @ weight.T + bias)
    assert pooled2.shape == (B2, H)
    assert jnp.allclose(pooled2, ref2, atol=2.5e-2, rtol=2.5e-2)

    # Fused first-token slice + N-tiled (2 weight column slabs) path: hidden=256.
    B3, H3 = 4, 256
    hs3 = jax.random.normal(jax.random.PRNGKey(2), (B3, S, H3), dtype=jnp.float32)
    bound3 = 1.0 / (H3 ** 0.5)
    w3 = jax.random.uniform(jax.random.PRNGKey(3), (H3, H3), minval=-bound3,
                            maxval=bound3, dtype=jnp.float32)
    b3 = jax.random.uniform(jax.random.PRNGKey(4), (H3,), minval=-bound3,
                            maxval=bound3, dtype=jnp.float32)
    pooled3 = jax.block_until_ready(sparse_bert_pooler(hs3, w3, b3))
    ref3_bf16 = jnp.tanh(
        jnp.dot(hs3[:, 0].astype(jnp.bfloat16), w3.T.astype(jnp.bfloat16),
                preferred_element_type=jnp.float32) + b3)
    ref3_f32 = jnp.tanh(hs3[:, 0] @ w3.T + b3)
    assert pooled3.shape == (B3, H3)
    assert jnp.allclose(pooled3, ref3_bf16, atol=1e-3, rtol=1e-3)
    assert jnp.allclose(pooled3, ref3_f32, atol=2.5e-2, rtol=2.5e-2)

    print("KERNEL_OK")
</pallas_src>

<mosaic_0001>
module attributes {stable_mosaic.version = 11 : i64} {
  func.func @_pooler_kernel(%arg0: i32, %arg1: i32, %arg2: memref<2x32xf32, #tpu.memory_space<vmem>>, %arg3: memref<32x32xbf16, #tpu.memory_space<vmem>>, %arg4: memref<1x32xf32, #tpu.memory_space<vmem>>, %arg5: memref<2x32xf32, #tpu.memory_space<vmem>>) attributes {dimension_semantics = [#tpu.dimension_semantics<parallel>, #tpu.dimension_semantics<parallel>], iteration_bounds = array<i64: 1, 1>, scalar_prefetch = 0 : i64, scratch_operands = 0 : i64, tpu.core_type = #tpu.core_type<tc>, window_params = [{pipeline_mode = #tpu.pipeline_mode<synchronous>, transform_indices = @transform_0, window_bounds = array<i64: 2, 32>}, {pipeline_mode = #tpu.pipeline_mode<synchronous>, transform_indices = @transform_1, window_bounds = array<i64: 32, 32>}, {pipeline_mode = #tpu.pipeline_mode<synchronous>, transform_indices = @transform_2, window_bounds = array<i64: 1, 32>}, {transform_indices = @transform_3, window_bounds = array<i64: 2, 32>}]} {
    %c0 = arith.constant 0 : index
    %c0_0 = arith.constant 0 : index
    %0 = vector.load %arg2[%c0, %c0_0] : memref<2x32xf32, #tpu.memory_space<vmem>>, vector<2x32xf32>
    %1 = arith.truncf %0 : vector<2x32xf32> to vector<2x32xbf16>
    %c0_1 = arith.constant 0 : index
    %c0_2 = arith.constant 0 : index
    %2 = vector.load %arg3[%c0_1, %c0_2] : memref<32x32xbf16, #tpu.memory_space<vmem>>, vector<32x32xbf16>
    %cst = arith.constant dense<0.000000e+00> : vector<2x32xf32>
    %3 = tpu.matmul %1, %2, %cst {dimension_numbers = #tpu.dot_dimension_numbers<[1], [0], [0], [1], [0, 0, 1, 1], [], []>} : vector<2x32xbf16>, vector<32x32xbf16>, vector<2x32xf32> -> vector<2x32xf32>
    %c0_3 = arith.constant 0 : index
    %c0_4 = arith.constant 0 : index
    %4 = vector.load %arg4[%c0_3, %c0_4] : memref<1x32xf32, #tpu.memory_space<vmem>>, vector<1x32xf32>
    %5 = vector.broadcast %4 : vector<1x32xf32> to vector<2x32xf32>
    %6 = arith.addf %3, %5 : vector<2x32xf32>
    %7 = math.tanh %6 : vector<2x32xf32>
    %c0_5 = arith.constant 0 : index
    %c0_6 = arith.constant 0 : index
    %8 = vector.load %arg5[%c0_5, %c0_6] : memref<2x32xf32, #tpu.memory_space<vmem>>, vector<2x32xf32>
    tpu.vector_store %arg5[%c0_5, %c0_6], %7 {strides = array<i32>} : memref<2x32xf32, #tpu.memory_space<vmem>>, vector<2x32xf32>,
    return
  }
  func.func @transform_0(%arg0: i32, %arg1: i32) -> (i32, i32) {
    %c0_i32 = arith.constant 0 : i32
    %c0_i32_0 = arith.constant 0 : i32
    return %arg0, %c0_i32 : i32, i32
  }
  func.func @transform_1(%arg0: i32, %arg1: i32) -> (i32, i32) {
    %c0_i32 = arith.constant 0 : i32
    %c0_i32_0 = arith.constant 0 : i32
    return %c0_i32, %arg1 : i32, i32
  }
  func.func @transform_2(%arg0: i32, %arg1: i32) -> (i32, i32) {
    %c0_i32 = arith.constant 0 : i32
    %c0_i32_0 = arith.constant 0 : i32
    return %c0_i32, %arg1 : i32, i32
  }
  func.func @transform_3(%arg0: i32, %arg1: i32) -> (i32, i32) {
    %c0_i32 = arith.constant 0 : i32
    return %arg0, %arg1 : i32, i32
  }
}

</mosaic_0001>

<llo_original>
// kernel: tpu_custom_call.1
$region0: #{tpu_custom_call.1}
  #allocation0 [shape = 'u32[]', space=smem, size = 0x4, offset = 0x4, fixed_abs, tag = 'smem constant byte address 0x4 - core index']
  #allocation1 [shape = 'u32[144,128]{1,0:T(1,128)}', space=vmem, size = 0x12000, scoped, tag = 'internal scratch']
  %s0 = inlined_call_operand.hbm [shape: f32[2,32], index: 0, kind: input, shape index: {}]
  %s1 = inlined_call_operand.hbm [shape: bf16[32,32], index: 1, kind: input, shape index: {}]
  %s2 = inlined_call_operand.vmem [shape: f32[1,32], index: 2, kind: input, shape index: {}]
  %s3 = inlined_call_operand.hbm [shape: f32[2,32], index: 3, kind: output, shape index: {}]
  %s4 = sld [smem:[#allocation0]]
  $region30: #{tpu_custom_call.1} parent=0
    _
  %s6 = ssub.s32 1, %s4
  %s7 = scalar_select 0, %s6, %s4
  $region1: #{tpu_custom_call.1} parent=0
    #allocation2 [shape = 'u8[1024]{0}', space=vmem, size = 0x400, scoped, tag = 'input window, operand 0, single buffered']
    #allocation3 [shape = 's32[1]{0}', space=sflag, size = 0x4, scoped, tag = 'scoped memory for tpu_custom_call.1']
    #allocation4 [shape = 's32[1]{0}', space=sflag, size = 0x4, scoped, tag = 'scoped memory for tpu_custom_call.1']
    #allocation5 [shape = 'u8[8192]{0}', space=vmem, size = 0x2000, scoped, tag = 'input window, operand 1, single buffered']
    #allocation6 [shape = 's32[1]{0}', space=sflag, size = 0x4, scoped, tag = 'scoped memory for tpu_custom_call.1']
    #allocation7 [shape = 'u8[1024]{0}', space=vmem, size = 0x400, scoped, tag = 'output window, operand 0, single buffered']
    %8 = vsyncpa [#allocation3], 0
    %9 = vsyncpa [#allocation6], 0
    %10 = vsyncpa [#allocation4], 0
    // Predicated region
    $region2: #{tpu_custom_call.1} parent=1 // pred_check
      _
    $region3: #{tpu_custom_call.1} parent=1 // pred_check_branch
      %12 = sbr.rel (0) target = $region5
    $region4: #{tpu_custom_call.1} parent=1 // pred_region
      %s14 = ssub.s32 32, 32
      %15 = vsyncadd [#allocation3], %s14
      %s17 = sshll.u32 [#allocation2], 4
      %s18 = int_to_ptr.vmem [resolvable:$true] %s17
      %20 = dma.hbm_to_vmem [thread:$0]  %s0, 32, %s18, [#allocation3]
    $region5: #{tpu_custom_call.1} parent=1 // pred_fallthru
      _
    // Predicated region
    $region6: #{tpu_custom_call.1} parent=1 // pred_check
      _
    $region7: #{tpu_custom_call.1} parent=1 // pred_check_branch
      %22 = sbr.rel (0) target = $region9
    $region8: #{tpu_custom_call.1} parent=1 // pred_region
      %s24 = ssub.s32 256, 256
      %25 = vsyncadd [#allocation6], %s24
      %s26 = sshll.u32 [#allocation5], 4
      %s27 = int_to_ptr.vmem [resolvable:$true] %s26
      %32 = dma.hbm_to_vmem [thread:$0]  %s1, 256, %s27, [#allocation6], 64, 64, 4
    $region9: #{tpu_custom_call.1} parent=1 // pred_fallthru
      _
    // Predicated region
    $region10: #{tpu_custom_call.1} parent=1 // pred_check
      _
    $region11: #{tpu_custom_call.1} parent=1 // pred_check_branch
      %34 = sbr.rel (0) target = $region13
    $region12: #{tpu_custom_call.1} parent=1 // pred_region
      _
    $region13: #{tpu_custom_call.1} parent=1 // pred_fallthru
      _
    // Predicated region
    $region14: #{tpu_custom_call.1} parent=1 // pred_check
      _
    $region15: #{tpu_custom_call.1} parent=1 // pred_check_branch
      %36 = sbr.rel (0) target = $region17
    $region16: #{tpu_custom_call.1} parent=1 // pred_region
      %37 = dma.done [#allocation3], 32
    $region17: #{tpu_custom_call.1} parent=1 // pred_fallthru
      _
    // Predicated region
    $region18: #{tpu_custom_call.1} parent=1 // pred_check
      _
    $region19: #{tpu_custom_call.1} parent=1 // pred_check_branch
      %39 = sbr.rel (0) target = $region21
    $region20: #{tpu_custom_call.1} parent=1 // pred_region
      %40 = dma.done [#allocation6], 256
    $region21: #{tpu_custom_call.1} parent=1 // pred_fallthru
      _
    %v42 = vld [vmem:[#allocation2] sm:$0x3]
    %v43 = vpack.c.bf16 %v42, %v42
    %v44 = vld [vmem:[#allocation5] sm:$0xf]
    %v45 = vld [vmem:[#allocation5 + $0x4] sm:$0xf]
    %v46 = vld [vmem:[#allocation5 + $0x8] sm:$0xf]
    %v47 = vld [vmem:[#allocation5 + $0xc] sm:$0xf]
    %v48 = vld [vmem:[%s2] sm:$0x1]
    %v50 = vlaneseq
    %v51 = vshrl.u32 %v50, 7
    %v52 = vsub.s32 0, %v51
    %v53 = vrot.slane %v48, %v52
    %v59 = vunpack.c.l.b16 %v44
    %v60 = vunpack.c.l.b16 %v45
    %v61 = vunpack.c.l.b16 %v46
    %v62 = vunpack.c.l.b16 %v47
    %v63 = vpack.c.b16 %v60, %v59
    %v64 = vpack.c.b16 %v62, %v61
    %vm67 = vcmask 261120
    %v69 = vsel %vm67, %v43, 0
    %71 = vmatprep.subr.bf16.mxu0 0
    %72 = vmatpush1.bf16.msra.mxu0 0
    %73 = vmatprep.subr.bf16.mxu0 0
    %74 = vmatpush1.bf16.msra.mxu0 0
    %75 = vmatprep.subr.bf16.mxu0 0
    %76 = vmatpush1.bf16.msra.mxu0 0
    %77 = vmatprep.subr.bf16.mxu0 0
    %78 = vmatpush1.bf16.msra.mxu0 0
    %79 = vmatprep.subr.bf16.mxu0 0
    %80 = vmatpush1.bf16.msra.mxu0 0
    %81 = vmatprep.subr.bf16.mxu0 0
    %82 = vmatpush1.bf16.msra.mxu0 0
    %83 = vmatprep.subr.bf16.mxu0 0
    %84 = vmatpush1.bf16.msra.mxu0 %v64
    %85 = vmatprep.subr.bf16.mxu0 0
    %86 = vmatpush1.bf16.msra.mxu0 %v63
    %87 = vmatprep.subr.bf16.mxu0 0
    %88 = vmatpush2.bf16.msra.mxu0 0
    %89 = vmatprep.subr.bf16.mxu0 0
    %90 = vmatpush2.bf16.msra.mxu0 0
    %91 = vmatprep.subr.bf16.mxu0 0
    %92 = vmatpush2.bf16.msra.mxu0 0
    %93 = vmatprep.subr.bf16.mxu0 0
    %94 = vmatpush2.bf16.msra.mxu0 0
    %95 = vmatprep.subr.bf16.mxu0 0
    %96 = vmatpush2.bf16.msra.mxu0 0
    %97 = vmatprep.subr.bf16.mxu0 0
    %98 = vmatpush2.bf16.msra.mxu0 0
    %99 = vmatprep.subr.bf16.mxu0 0
    %100 = vmatpush2.bf16.msra.mxu0 0
    %101 = vmatprep.subr.bf16.mxu0 0
    %102 = vmatpush2.bf16.msra.mxu0 0
    %103 = vmatprep.mubr.bf16.mxu0 0
    %104 = vmatmul.mubr.bf16.gmra.mxu0 %v69
    %v105 = vpop.f32.mrf.mxu0
    %v106 = vadd.f32 %v53, %v105
    %v107 = vpop.f32.mrf.mxu0
    %v108 = vpop.f32.mrf.mxu0
    %v109 = vpop.f32.mrf.mxu0
    %110 = vdwg.mxu0
    %v111 = vtanh.pop %v106
    %vm112 = vcmask 254976
    %113 = vst.msk [vmem:[#allocation7] sm:$0x3] %vm112, %v111
    // Predicated region
    $region22: #{tpu_custom_call.1} parent=1 // pred_check
      _
    $region23: #{tpu_custom_call.1} parent=1 // pred_check_branch
      %115 = sbr.rel (0) target = $region25
    $region24: #{tpu_custom_call.1} parent=1 // pred_region
      %s117 = ssub.s32 32, 32
      %118 = vsyncadd [#allocation4], %s117
      %s120 = sshll.u32 [#allocation7], 4
      %s121 = int_to_ptr.vmem [resolvable:$true] %s120
      %123 = dma.vmem_to_hbm [thread:$0]  %s121, 32, %s3, [#allocation4]
    $region25: #{tpu_custom_call.1} parent=1 // pred_fallthru
      _
    // Predicated region
    $region26: #{tpu_custom_call.1} parent=1 // pred_check
      _
    $region27: #{tpu_custom_call.1} parent=1 // pred_check_branch
      %125 = sbr.rel (0) target = $region29
    $region28: #{tpu_custom_call.1} parent=1 // pred_region
      %126 = dma.done [#allocation4], 32
    $region29: #{tpu_custom_call.1} parent=1 // pred_fallthru
      _
    %127 = vsyncpa [#allocation3], 1
    %128 = vsyncpa [#allocation6], 1
    %129 = vsyncpa [#allocation4], 1

</llo_original>
